<compile_context>
chip_gen: v5e
topology: v5e:2x2
jax: 0.10.0
libtpu: 0.0.40
codegen_flags: <defaults>
</compile_context>

<pallas_src>
import functools

import jax
import jax.numpy as jnp
from jax.experimental import pallas as pl
from jax.experimental.pallas import tpu as pltpu


# --------------------------------------------------------------------------------------
# Tiling helpers
# --------------------------------------------------------------------------------------

def _round_up(n, m):
    return ((n + m - 1) // m) * m


def _pick_tile(dim, unit, cap):
    """Largest multiple of `unit` that divides `dim` and is <= cap; else the full dim."""
    if dim % unit != 0:
        return dim
    best = unit
    t = unit
    limit = min(dim, max(cap, unit))
    while t <= limit:
        if dim % t == 0:
            best = t
        t += unit
    return best


def _vmem_budget_bytes():
    """~75% of physical VMEM (48 MiB on v7x, ~96 MiB on v5e/v6e)."""
    cap = 64 * 1024 * 1024
    try:
        info = pltpu.get_tpu_info()
        cap = int(getattr(info, "vmem_capacity_bytes", cap))
    except Exception:
        pass
    return (cap * 3) // 4


def _choose_fused_ct(B, C, Sp, budget):
    """Channel tile for the fused single-pass path, or 0 if nothing fits."""
    per_chan = B * Sp * 4                       # fp32 working set per channel
    limit = budget // 5                         # x dbuf(2) + y dbuf(2) + fp32 temp
    if per_chan <= 0:
        return 0
    max_ct = limit // per_chan
    if C % 8 == 0:
        if max_ct < 8:
            return 0
        ct = _pick_tile(C, 8, min(256, int(max_ct)))
    else:
        if max_ct < C:
            return 0
        ct = C
    # megacore: make sure there are >=2 channel blocks when cheaply possible (v7x, 2 TCs)
    if C // ct < 2 and C >= 16 and C % 16 == 0:
        ct = C // 2
    return ct


def _choose_two_pass_tiles(C, S, budget):
    """(ct, st, Sp) for the streaming two-pass path."""
    block_budget = budget // 6                  # x + y double-buffered + headroom
    # channel (sublane) tile
    ct = _pick_tile(C, 8, 256) if C % 8 == 0 else C
    # megacore: >=2 channel blocks when cheaply possible (v7x)
    if C // ct < 2 and C >= 16 and C % 16 == 0:
        ct = C // 2
    # spatial (lane) tile: large, 128-aligned power-of-two, bounded padding waste
    st_cap = max(128, (block_budget // max(ct * 4, 1)) // 128 * 128)
    st = 128
    while st * 2 <= min(8192, st_cap):
        st *= 2
    while st > 128 and _round_up(S, st) > S + max(S // 8, 128):
        st //= 2
    Sp = _round_up(S, st)
    return ct, st, Sp


# --------------------------------------------------------------------------------------
# Kernels
# --------------------------------------------------------------------------------------

def _bn_fused_kernel(x_ref, g_ref, b_ref, o_ref, *, inv_n, eps):
    """Single pass: stats + normalize for one channel block.

    x_ref, o_ref: [B, ct, Sp];  g_ref, b_ref: [ct, 1] fp32.
    """
    x = x_ref[...].astype(jnp.float32)
    s_l = jnp.sum(x, axis=2, keepdims=True)                 # lane reduce   -> [B, ct, 1]
    sq_l = jnp.sum(x * x, axis=2, keepdims=True)
    mean = jnp.sum(s_l, axis=0, keepdims=True) * inv_n      # batch reduce  -> [1, ct, 1]
    msq = jnp.sum(sq_l, axis=0, keepdims=True) * inv_n
    var = jnp.maximum(msq - mean * mean, 0.0)               # clamp cancellation
    scale = g_ref[...].astype(jnp.float32)[None] * jax.lax.rsqrt(var + eps)
    shift = b_ref[...].astype(jnp.float32)[None] - mean * scale
    o_ref[...] = (x * scale + shift).astype(o_ref.dtype)


def _bn_stats_kernel(x_ref, g_ref, b_ref, scale_ref, shift_ref,
                     sum_ref, sq_ref, *, inv_n, eps, st):
    """Pass 1: accumulate per-channel sum / sum-of-squares, finalize folded scale/shift.

    x_ref:                [ct, st]
    g_ref, b_ref:         [ct, 1]        (gamma, beta, fp32)
    scale_ref, shift_ref: [ct, 1]        (outputs, written on last reduction step)
    sum_ref, sq_ref:      [ct, 128] fp32 (lane-wide VMEM accumulators -> VALU-only per step)
    """
    b_i = pl.program_id(1)
    s_i = pl.program_id(2)

    @pl.when((b_i == 0) & (s_i == 0))
    def _():
        sum_ref[...] = jnp.zeros_like(sum_ref)
        sq_ref[...] = jnp.zeros_like(sq_ref)

    # Lane-chunked accumulation: folds st into 128-lane chunks with plain VALU adds; the
    # single cross-lane (XLU) reduce happens only once, in the finalize below.
    for k in range(st // 128):
        xk = x_ref[:, k * 128:(k + 1) * 128].astype(jnp.float32)
        sum_ref[...] += xk
        sq_ref[...] += xk * xk

    @pl.when((b_i == pl.num_programs(1) - 1) & (s_i == pl.num_programs(2) - 1))
    def _():
        total = jnp.sum(sum_ref[...], axis=-1, keepdims=True)       # [ct, 1]
        total_sq = jnp.sum(sq_ref[...], axis=-1, keepdims=True)
        mean = total * inv_n
        var = jnp.maximum(total_sq * inv_n - mean * mean, 0.0)      # biased var, clamped
        scale = g_ref[...].astype(jnp.float32) * jax.lax.rsqrt(var + eps)
        scale_ref[...] = scale
        shift_ref[...] = b_ref[...].astype(jnp.float32) - mean * scale


def _bn_apply_kernel(x_ref, scale_ref, shift_ref, o_ref):
    """Pass 2: y = x * scale_c + shift_c (per-channel constants broadcast over lanes)."""
    x = x_ref[...].astype(jnp.float32)
    o_ref[...] = (x * scale_ref[...] + shift_ref[...]).astype(o_ref.dtype)


def _bn1d_kernel(x_ref, g_ref, b_ref, o_ref, *, inv_n, eps):
    """Rank-2 ([B, L]) fused kernel: features on lanes, stats reduced over sublanes (batch).

    x_ref, o_ref: [B, lt];  g_ref, b_ref: [1, lt] fp32.
    """
    x = x_ref[...].astype(jnp.float32)
    mean = jnp.sum(x, axis=0, keepdims=True) * inv_n            # [1, lt]
    msq = jnp.sum(x * x, axis=0, keepdims=True) * inv_n
    var = jnp.maximum(msq - mean * mean, 0.0)
    scale = g_ref[...] * jax.lax.rsqrt(var + eps)
    shift = b_ref[...] - mean * scale
    o_ref[...] = (x * scale + shift).astype(o_ref.dtype)


# --------------------------------------------------------------------------------------
# Drivers
# --------------------------------------------------------------------------------------

def _bn_bcs(x3, gamma, beta, eps, allow_fused=True):
    """Batch norm on a [B, C, S] tensor (stats over B and S per channel)."""
    B, C, S = x3.shape
    budget = _vmem_budget_bytes()
    inv_n = 1.0 / float(B * S)
    out_dtype = x3.dtype
    itemsize = jnp.dtype(out_dtype).itemsize
    g2 = gamma.reshape(C, 1).astype(jnp.float32)
    b2 = beta.reshape(C, 1).astype(jnp.float32)

    # ---- fused single-pass path (channel slab resident in VMEM): 2N HBM traffic -----
    Sp_min = _round_up(max(S, 1), 128)
    ct_f = _choose_fused_ct(B, C, Sp_min, budget) if allow_fused else 0
    if ct_f:
        Sp = Sp_min
        xp = x3 if Sp == S else jnp.pad(x3, ((0, 0), (0, 0), (0, Sp - S)))
        n_elem = B * C * Sp
        yp = pl.pallas_call(
            functools.partial(_bn_fused_kernel, inv_n=inv_n, eps=eps),
            out_shape=jax.ShapeDtypeStruct((B, C, Sp), out_dtype),
            grid=(C // ct_f,),
            in_specs=[pl.BlockSpec((B, ct_f, Sp), lambda c: (0, c, 0)),
                      pl.BlockSpec((ct_f, 1), lambda c: (c, 0)),
                      pl.BlockSpec((ct_f, 1), lambda c: (c, 0))],
            out_specs=pl.BlockSpec((B, ct_f, Sp), lambda c: (0, c, 0)),
            compiler_params=pltpu.CompilerParams(
                dimension_semantics=("parallel",),
                vmem_limit_bytes=budget),
            cost_estimate=pl.CostEstimate(
                flops=5 * n_elem, transcendentals=C,
                bytes_accessed=2 * n_elem * itemsize),
        )(xp, g2, b2)
        return yp if Sp == S else yp[:, :, :S]

    # ---- two-pass streaming path: 2 reads + 1 write of x ----------------------------
    ct, st, Sp = _choose_two_pass_tiles(C, S, budget)
    xp = x3 if Sp == S else jnp.pad(x3, ((0, 0), (0, 0), (0, Sp - S)))
    n_elem = B * C * Sp
    grid = (C // ct, B, Sp // st)
    x_spec = pl.BlockSpec((None, ct, st), lambda c, b, s: (b, c, s))
    chan_spec = pl.BlockSpec((ct, 1), lambda c, b, s: (c, 0))

    scale, shift = pl.pallas_call(
        functools.partial(_bn_stats_kernel, inv_n=inv_n, eps=eps, st=st),
        out_shape=(jax.ShapeDtypeStruct((C, 1), jnp.float32),
                   jax.ShapeDtypeStruct((C, 1), jnp.float32)),
        grid=grid,
        in_specs=[x_spec, chan_spec, chan_spec],
        out_specs=(chan_spec, chan_spec),
        scratch_shapes=[pltpu.VMEM((ct, 128), jnp.float32),
                        pltpu.VMEM((ct, 128), jnp.float32)],
        compiler_params=pltpu.CompilerParams(
            dimension_semantics=("parallel", "arbitrary", "arbitrary"),
            vmem_limit_bytes=budget),
        cost_estimate=pl.CostEstimate(
            flops=3 * n_elem, transcendentals=C,
            bytes_accessed=n_elem * itemsize),
    )(xp, g2, b2)

    yp = pl.pallas_call(
        _bn_apply_kernel,
        out_shape=jax.ShapeDtypeStruct((B, C, Sp), out_dtype),
        grid=grid,
        in_specs=[x_spec, chan_spec, chan_spec],
        out_specs=x_spec,
        compiler_params=pltpu.CompilerParams(
            dimension_semantics=("parallel", "parallel", "parallel"),
            vmem_limit_bytes=budget),
        cost_estimate=pl.CostEstimate(
            flops=2 * n_elem, transcendentals=0,
            bytes_accessed=2 * n_elem * itemsize),
    )(xp, scale, shift)
    return yp if Sp == S else yp[:, :, :S]


def _bn_rank2(x, gamma, beta, eps):
    """BatchNorm1d on [B, L]: features lane-dense, per-feature stats over the batch."""
    B, L = x.shape
    budget = _vmem_budget_bytes()
    Lp = _round_up(L, 128)
    lt_cap = ((budget // 5) // max(B * 4, 1)) // 128 * 128
    if lt_cap >= 128:
        lt = _pick_tile(Lp, 128, min(8192, lt_cap))
        pad = Lp - L
        xp = x if pad == 0 else jnp.pad(x, ((0, 0), (0, pad)))
        g2 = gamma.astype(jnp.float32).reshape(1, L)
        b2 = beta.astype(jnp.float32).reshape(1, L)
        if pad:
            g2 = jnp.pad(g2, ((0, 0), (0, pad)))
            b2 = jnp.pad(b2, ((0, 0), (0, pad)))
        n_elem = B * Lp
        itemsize = jnp.dtype(x.dtype).itemsize
        yp = pl.pallas_call(
            functools.partial(_bn1d_kernel, inv_n=1.0 / float(B), eps=eps),
            out_shape=jax.ShapeDtypeStruct((B, Lp), x.dtype),
            grid=(Lp // lt,),
            in_specs=[pl.BlockSpec((B, lt), lambda l: (0, l)),
                      pl.BlockSpec((1, lt), lambda l: (0, l)),
                      pl.BlockSpec((1, lt), lambda l: (0, l))],
            out_specs=pl.BlockSpec((B, lt), lambda l: (0, l)),
            compiler_params=pltpu.CompilerParams(
                dimension_semantics=("parallel",),
                vmem_limit_bytes=budget),
            cost_estimate=pl.CostEstimate(
                flops=5 * n_elem, transcendentals=Lp,
                bytes_accessed=2 * n_elem * itemsize),
        )(xp, g2, b2)
        return yp if pad == 0 else yp[:, :L]
    # Huge-batch fallback: put the batch on lanes via the rank-3 path on x^T ([1, L, B]).
    y3 = _bn_bcs(jnp.transpose(x)[None], gamma, beta, eps)
    return jnp.transpose(y3[0])


def batch_normalization(x, gamma, beta, eps=1e-5):
    """Matches the PyTorch module: [B,L], [B,C,L], [B,C,H,W], [B,C,D,H,W]."""
    if x.ndim == 2:
        return _bn_rank2(x, gamma, beta, eps)
    elif 3 <= x.ndim <= 5:
        x3 = x.reshape(x.shape[0], x.shape[1], -1)
        y3 = _bn_bcs(x3, gamma, beta, eps)
        return y3.reshape(x.shape)
    raise RuntimeError("Batch norm needs input of rank 2..5.")


# --------------------------------------------------------------------------------------
# Reference + test
# --------------------------------------------------------------------------------------

def _reference_nd(x, gamma, beta, eps=1e-5):
    xf = x.astype(jnp.float32)
    axes = (0,) + tuple(range(2, x.ndim))
    mean = jnp.mean(xf, axis=axes, keepdims=True)
    var = jnp.mean((xf - mean) ** 2, axis=axes, keepdims=True)
    shape = [1] * x.ndim
    shape[1] = -1
    y = (xf - mean) / jnp.sqrt(var + eps)
    return (y * gamma.reshape(shape) + beta.reshape(shape)).astype(x.dtype)


if __name__ == "__main__":
    key = jax.random.PRNGKey(0)
    B, C, H, W = 2, 4, 16, 16
    x = jax.random.normal(key, (B, C, H, W), dtype=jnp.float32) * 2.0 + 0.5

    # PyTorch BatchNorm2d defaults: weight=1, bias=0, eps=1e-5.
    gamma = jnp.ones((C,), dtype=jnp.float32)
    beta = jnp.zeros((C,), dtype=jnp.float32)

    # 4-D (BatchNorm2d) path -> fused single-pass kernel.
    y = jax.block_until_ready(batch_normalization(x, gamma, beta))
    y_ref = _reference_nd(x, gamma, beta)
    assert y.shape == x.shape and y.dtype == x.dtype
    assert jnp.allclose(y, y_ref, atol=1e-4, rtol=1e-4), "fused path mismatch vs reference"

    # Exercise the two-pass streaming path explicitly (same math, stats + apply kernels).
    y_tp = _bn_bcs(x.reshape(B, C, -1), gamma, beta, 1e-5, allow_fused=False).reshape(x.shape)
    y_tp = jax.block_until_ready(y_tp)
    assert jnp.allclose(y_tp, y_ref, atol=1e-4, rtol=1e-4), "two-pass path mismatch vs reference"

    # Rank-2 (BatchNorm1d on [B, L]) lane-dense path.
    x2 = jax.random.normal(jax.random.PRNGKey(1), (8, 32), dtype=jnp.float32) * 1.5 - 0.25
    g1 = jnp.ones((32,), dtype=jnp.float32)
    b1 = jnp.zeros((32,), dtype=jnp.float32)
    y2 = jax.block_until_ready(batch_normalization(x2, g1, b1))
    m2 = jnp.mean(x2, axis=0, keepdims=True)
    v2 = jnp.mean((x2 - m2) ** 2, axis=0, keepdims=True)
    y2_ref = (x2 - m2) / jnp.sqrt(v2 + 1e-5)
    assert y2.shape == x2.shape and y2.dtype == x2.dtype
    assert jnp.allclose(y2, y2_ref, atol=1e-4, rtol=1e-4), "rank-2 path mismatch vs reference"

    print("KERNEL_OK")
</pallas_src>

<mosaic_0001>
module attributes {stable_mosaic.version = 11 : i64} {
  func.func @_bn_fused_kernel(%arg0: i32, %arg1: memref<2x4x256xf32, #tpu.memory_space<vmem>>, %arg2: memref<4x1xf32, #tpu.memory_space<vmem>>, %arg3: memref<4x1xf32, #tpu.memory_space<vmem>>, %arg4: memref<2x4x256xf32, #tpu.memory_space<vmem>>) attributes {dimension_semantics = [#tpu.dimension_semantics<parallel>], iteration_bounds = array<i64: 1>, scalar_prefetch = 0 : i64, scratch_operands = 0 : i64, tpu.core_type = #tpu.core_type<tc>, window_params = [{transform_indices = @transform_0, window_bounds = array<i64: 2, 4, 256>}, {transform_indices = @transform_1, window_bounds = array<i64: 4, 1>}, {transform_indices = @transform_2, window_bounds = array<i64: 4, 1>}, {transform_indices = @transform_3, window_bounds = array<i64: 2, 4, 256>}]} {
    %c0 = arith.constant 0 : index
    %c0_0 = arith.constant 0 : index
    %c0_1 = arith.constant 0 : index
    %0 = vector.load %arg1[%c0, %c0_0, %c0_1] : memref<2x4x256xf32, #tpu.memory_space<vmem>>, vector<2x4x256xf32>
    %cst = arith.constant dense<0.000000e+00> : vector<2x4xf32>
    %1 = vector.multi_reduction <add>, %0, %cst [2] : vector<2x4x256xf32> to vector<2x4xf32>
    %2 = vector.shape_cast %1 : vector<2x4xf32> to vector<2x4x1xf32>
    %3 = arith.mulf %0, %0 : vector<2x4x256xf32>
    %cst_2 = arith.constant dense<0.000000e+00> : vector<2x4xf32>
    %4 = vector.multi_reduction <add>, %3, %cst_2 [2] : vector<2x4x256xf32> to vector<2x4xf32>
    %5 = vector.shape_cast %4 : vector<2x4xf32> to vector<2x4x1xf32>
    %cst_3 = arith.constant dense<0.000000e+00> : vector<4x1xf32>
    %6 = vector.multi_reduction <add>, %2, %cst_3 [0] : vector<2x4x1xf32> to vector<4x1xf32>
    %7 = vector.shape_cast %6 : vector<4x1xf32> to vector<1x4x1xf32>
    %cst_4 = arith.constant 0.001953125 : f32
    %8 = vector.broadcast %cst_4 : f32 to vector<1x4x1xf32>
    %9 = arith.mulf %7, %8 : vector<1x4x1xf32>
    %cst_5 = arith.constant dense<0.000000e+00> : vector<4x1xf32>
    %10 = vector.multi_reduction <add>, %5, %cst_5 [0] : vector<2x4x1xf32> to vector<4x1xf32>
    %11 = vector.shape_cast %10 : vector<4x1xf32> to vector<1x4x1xf32>
    %cst_6 = arith.constant 0.001953125 : f32
    %12 = vector.broadcast %cst_6 : f32 to vector<1x4x1xf32>
    %13 = arith.mulf %11, %12 : vector<1x4x1xf32>
    %14 = arith.mulf %9, %9 : vector<1x4x1xf32>
    %15 = arith.subf %13, %14 : vector<1x4x1xf32>
    %cst_7 = arith.constant 0.000000e+00 : f32
    %16 = vector.broadcast %cst_7 : f32 to vector<1x4x1xf32>
    %17 = arith.maximumf %15, %16 : vector<1x4x1xf32>
    %c0_8 = arith.constant 0 : index
    %c0_9 = arith.constant 0 : index
    %18 = vector.load %arg2[%c0_8, %c0_9] : memref<4x1xf32, #tpu.memory_space<vmem>>, vector<4x1xf32>
    %19 = vector.shape_cast %18 : vector<4x1xf32> to vector<1x4x1xf32>
    %cst_10 = arith.constant 9.99999974E-6 : f32
    %20 = vector.broadcast %cst_10 : f32 to vector<1x4x1xf32>
    %21 = arith.addf %17, %20 : vector<1x4x1xf32>
    %22 = math.rsqrt %21 : vector<1x4x1xf32>
    %23 = arith.mulf %19, %22 : vector<1x4x1xf32>
    %c0_11 = arith.constant 0 : index
    %c0_12 = arith.constant 0 : index
    %24 = vector.load %arg3[%c0_11, %c0_12] : memref<4x1xf32, #tpu.memory_space<vmem>>, vector<4x1xf32>
    %25 = vector.shape_cast %24 : vector<4x1xf32> to vector<1x4x1xf32>
    %26 = arith.mulf %9, %23 : vector<1x4x1xf32>
    %27 = arith.subf %25, %26 : vector<1x4x1xf32>
    %28 = vector.broadcast %23 : vector<1x4x1xf32> to vector<2x4x256xf32>
    %29 = arith.mulf %0, %28 : vector<2x4x256xf32>
    %30 = vector.broadcast %27 : vector<1x4x1xf32> to vector<2x4x256xf32>
    %31 = arith.addf %29, %30 : vector<2x4x256xf32>
    %c0_13 = arith.constant 0 : index
    %c0_14 = arith.constant 0 : index
    %c0_15 = arith.constant 0 : index
    %32 = vector.load %arg4[%c0_13, %c0_14, %c0_15] : memref<2x4x256xf32, #tpu.memory_space<vmem>>, vector<2x4x256xf32>
    tpu.vector_store %arg4[%c0_13, %c0_14, %c0_15], %31 {strides = array<i32>} : memref<2x4x256xf32, #tpu.memory_space<vmem>>, vector<2x4x256xf32>,
    return
  }
  func.func @transform_0(%arg0: i32) -> (i32, i32, i32) {
    %c0_i32 = arith.constant 0 : i32
    %c0_i32_0 = arith.constant 0 : i32
    %c0_i32_1 = arith.constant 0 : i32
    return %c0_i32, %arg0, %c0_i32_0 : i32, i32, i32
  }
  func.func @transform_1(%arg0: i32) -> (i32, i32) {
    %c0_i32 = arith.constant 0 : i32
    %c0_i32_0 = arith.constant 0 : i32
    return %arg0, %c0_i32 : i32, i32
  }
  func.func @transform_2(%arg0: i32) -> (i32, i32) {
    %c0_i32 = arith.constant 0 : i32
    %c0_i32_0 = arith.constant 0 : i32
    return %arg0, %c0_i32 : i32, i32
  }
  func.func @transform_3(%arg0: i32) -> (i32, i32, i32) {
    %c0_i32 = arith.constant 0 : i32
    %c0_i32_0 = arith.constant 0 : i32
    %c0_i32_1 = arith.constant 0 : i32
    return %c0_i32, %arg0, %c0_i32_0 : i32, i32, i32
  }
}

</mosaic_0001>

<llo_original>
// kernel: tpu_custom_call.1
$region0: #{tpu_custom_call.1}
  #allocation0 [shape = 'u32[]', space=smem, size = 0x4, offset = 0x4, fixed_abs, tag = 'smem constant byte address 0x4 - core index']
  #allocation1 [shape = 'u32[72,128]{1,0:T(1,128)}', space=vmem, size = 0x9000, scoped, tag = 'internal scratch']
  %s0 = inlined_call_operand.hbm [shape: f32[2,4,256], index: 0, kind: input, shape index: {}]
  %s1 = inlined_call_operand.vmem [shape: f32[4,1], index: 1, kind: input, shape index: {}]
  %s2 = inlined_call_operand.vmem [shape: f32[4,1], index: 2, kind: input, shape index: {}]
  %s3 = inlined_call_operand.hbm [shape: f32[2,4,256], index: 3, kind: output, shape index: {}]
  %s4 = sld [smem:[#allocation0]]
  $region26: #{tpu_custom_call.1} parent=0
    _
  %s6 = ssub.s32 1, %s4
  %s7 = scalar_select 0, %s6, %s4
  $region1: #{tpu_custom_call.1} parent=0
    #allocation2 [shape = 'u8[8192]{0}', space=vmem, size = 0x2000, scoped, tag = 'input window, operand 0, single buffered']
    #allocation3 [shape = 's32[1]{0}', space=sflag, size = 0x4, scoped, tag = 'scoped memory for tpu_custom_call.1']
    #allocation4 [shape = 's32[1]{0}', space=sflag, size = 0x4, scoped, tag = 'scoped memory for tpu_custom_call.1']
    #allocation5 [shape = 'u8[8192]{0}', space=vmem, size = 0x2000, scoped, tag = 'output window, operand 0, single buffered']
    %8 = vsyncpa [#allocation3], 0
    %9 = vsyncpa [#allocation4], 0
    // Predicated region
    $region2: #{tpu_custom_call.1} parent=1 // pred_check
      _
    $region3: #{tpu_custom_call.1} parent=1 // pred_check_branch
      %11 = sbr.rel (0) target = $region5
    $region4: #{tpu_custom_call.1} parent=1 // pred_region
      %13 = vsyncadd [#allocation3], 0
      %s14 = sshll.u32 %s0, 4
      %s15 = int_to_ptr.hbm [resolvable:$true] %s14
      %s16 = sshll.u32 [#allocation2], 4
      %s17 = int_to_ptr.vmem [resolvable:$true] %s16
      %22 = dma.hbm_to_vmem [thread:$0]  %s15, 256, %s17, [#allocation3], 128, 128, 8
    $region5: #{tpu_custom_call.1} parent=1 // pred_fallthru
      _
    // Predicated region
    $region6: #{tpu_custom_call.1} parent=1 // pred_check
      _
    $region7: #{tpu_custom_call.1} parent=1 // pred_check_branch
      %24 = sbr.rel (0) target = $region9
    $region8: #{tpu_custom_call.1} parent=1 // pred_region
      _
    $region9: #{tpu_custom_call.1} parent=1 // pred_fallthru
      _
    // Predicated region
    $region10: #{tpu_custom_call.1} parent=1 // pred_check
      _
    $region11: #{tpu_custom_call.1} parent=1 // pred_check_branch
      %26 = sbr.rel (0) target = $region13
    $region12: #{tpu_custom_call.1} parent=1 // pred_region
      _
    $region13: #{tpu_custom_call.1} parent=1 // pred_fallthru
      _
    // Predicated region
    $region14: #{tpu_custom_call.1} parent=1 // pred_check
      _
    $region15: #{tpu_custom_call.1} parent=1 // pred_check_branch
      %28 = sbr.rel (0) target = $region17
    $region16: #{tpu_custom_call.1} parent=1 // pred_region
      %30 = dma.done [#allocation3], 256
    $region17: #{tpu_custom_call.1} parent=1 // pred_fallthru
      _
    %v31 = vld [vmem:[#allocation2] sm:$0xff]
    %v32 = vld [vmem:[#allocation2 + $0x8] sm:$0xff]
    %35 = vst [vmem:[#allocation1] ss:$2 sm:$0xff] %v31
    %v36 = vld.sshfl [vmem:[#allocation1] sm:$0xff pattern:$0x75316420]
    %v37 = vld.sshfl [vmem:[#allocation1 + $0x8] sm:$0xff pattern:$0x75316420]
    %s38 = scalar_lea.vmem [#allocation1], 16
    %39 = vst [vmem:[%s38] ss:$2 sm:$0xff] %v32
    %v40 = vld.sshfl [vmem:[#allocation1 + $0x10] sm:$0xff pattern:$0x75316420]
    %v41 = vld.sshfl [vmem:[#allocation1 + $0x18] sm:$0xff pattern:$0x75316420]
    %vm46 = vcmask 1043456
    %v47 = vsel %vm46, %v36, 0.0
    %v48 = vsel %vm46, %v37, 0.0
    %v49 = vadd.f32 %v47, %v48
    %50 = vadd.xlane.f32.xlu0 %v49
    %v51 = vpop.xlane.xlu0 %50
    %v52 = vsel %vm46, %v40, 0.0
    %v53 = vsel %vm46, %v41, 0.0
    %v54 = vadd.f32 %v52, %v53
    %55 = vadd.xlane.f32.xlu0 %v54
    %v56 = vpop.xlane.xlu0 %55
    %v57 = vmul.f32 %v31, %v31
    %v58 = vmul.f32 %v32, %v32
    %61 = vst [vmem:[#allocation1] ss:$2 sm:$0xff] %v57
    %v62 = vld.sshfl [vmem:[#allocation1] sm:$0xff pattern:$0x75316420]
    %v63 = vld.sshfl [vmem:[#allocation1 + $0x8] sm:$0xff pattern:$0x75316420]
    %s64 = scalar_lea.vmem [#allocation1], 16
    %65 = vst [vmem:[%s64] ss:$2 sm:$0xff] %v58
    %v66 = vld.sshfl [vmem:[#allocation1 + $0x10] sm:$0xff pattern:$0x75316420]
    %v67 = vld.sshfl [vmem:[#allocation1 + $0x18] sm:$0xff pattern:$0x75316420]
    %v72 = vsel %vm46, %v62, 0.0
    %v73 = vsel %vm46, %v63, 0.0
    %v74 = vadd.f32 %v72, %v73
    %75 = vadd.xlane.f32.xlu0 %v74
    %v76 = vpop.xlane.xlu0 %75
    %v77 = vsel %vm46, %v66, 0.0
    %v78 = vsel %vm46, %v67, 0.0
    %v79 = vadd.f32 %v77, %v78
    %80 = vadd.xlane.f32.xlu0 %v79
    %v81 = vpop.xlane.xlu0 %80
    %v82 = vsel %vm46, %v51, 0.0
    %v83 = vsel %vm46, %v56, 0.0
    %v84 = vadd.f32 %v82, %v83
    %v85 = vmul.f32 %v84, 0.001953125
    %v86 = vsel %vm46, %v76, 0.0
    %v87 = vsel %vm46, %v81, 0.0
    %v88 = vadd.f32 %v86, %v87
    %v89 = vmul.f32 %v88, 0.001953125
    %v90 = vmul.f32 %v85, %v85
    %v91 = vsub.f32 %v89, %v90
    %v92 = vmax.f32 %v91, 0.0
    %v93 = vld [vmem:[%s1] sm:$0xf]
    %v94 = vadd.f32 %v92, 1e-05
    %v95 = vrsqrt.pop %v94
    %v96 = vmul.f32 %v95, %v94
    %v97 = vmul.f32 %v96, %v95
    %v98 = vmul.f32 0.5, %v97
    %v99 = vsub.f32 1.5, %v98
    %v100 = vmul.f32 %v95, %v99
    %vm101 = vweird.f32 %v94
    %vm102 = vweird.f32 %v95
    %vm103 = vmor %vm101, %vm102
    %v104 = vsel %vm103, %v95, %v100
    %v105 = vmul.f32 %v93, %v104
    %v106 = vld [vmem:[%s2] sm:$0xf]
    %v107 = vmul.f32 %v85, %v105
    %v108 = vsub.f32 %v106, %v107
    %110 = vset.pattern.permute.xlu0 0
    %111 = vperm.xlu0 %110, %v105
    %v112 = vpop.permute.xlu0 %111
    %v114 = vunpack.c.l.s4 839922192
    %v115 = vunpack.c.0.s8 %v114
    %v116 = vperm.slane %v112, %v115
    %v118 = vmul.f32 %v31, %v116
    %v119 = vmul.f32 %v32, %v116
    %121 = vset.pattern.permute.xlu0 0
    %122 = vperm.xlu0 %121, %v108
    %v123 = vpop.permute.xlu0 %122
    %v125 = vunpack.c.l.s4 839922192
    %v126 = vunpack.c.0.s8 %v125
    %v127 = vperm.slane %v123, %v126
    %v129 = vadd.f32 %v118, %v127
    %v130 = vadd.f32 %v119, %v127
    %131 = vst [vmem:[#allocation5] sm:$0xff] %v129
    %132 = vst [vmem:[#allocation5 + $0x8] sm:$0xff] %v130
    // Predicated region
    $region18: #{tpu_custom_call.1} parent=1 // pred_check
      _
    $region19: #{tpu_custom_call.1} parent=1 // pred_check_branch
      %134 = sbr.rel (0) target = $region21
    $region20: #{tpu_custom_call.1} parent=1 // pred_region
      %136 = vsyncadd [#allocation4], 0
      %s137 = sshll.u32 [#allocation5], 4
      %s138 = int_to_ptr.vmem [resolvable:$true] %s137
      %s139 = sshll.u32 %s3, 4
      %s140 = int_to_ptr.hbm [resolvable:$true] %s139
      %145 = dma.vmem_to_hbm [thread:$0]  %s138, 256, %s140, [#allocation4], 128, 128, 8
    $region21: #{tpu_custom_call.1} parent=1 // pred_fallthru
      _
    // Predicated region
    $region22: #{tpu_custom_call.1} parent=1 // pred_check
      _
    $region23: #{tpu_custom_call.1} parent=1 // pred_check_branch
      %147 = sbr.rel (0) target = $region25
    $region24: #{tpu_custom_call.1} parent=1 // pred_region
      %149 = dma.done [#allocation4], 256
    $region25: #{tpu_custom_call.1} parent=1 // pred_fallthru
      _
    %150 = vsyncpa [#allocation3], 1
    %151 = vsyncpa [#allocation4], 1

</llo_original>
